<compile_context>
chip_gen: v6e
topology: v6e:2x2x1
jax: 0.10.0
libtpu: 0.0.40
codegen_flags: <defaults>
</compile_context>

<pallas_src>
import functools

import jax
import jax.numpy as jnp
from jax.experimental import pallas as pl
from jax.experimental.pallas import tpu as pltpu


def _round_up(x, m):
    return (x + m - 1) // m * m


def _skipblock_kernel(x_ref, w_ref, b_ref, out_ref, xpad_ref, col_ref, *, width):
    # x_ref:    (1, C, H*W)          input pixels, flat row-major (lane-dense)
    # w_ref:    (C, 9*C)             conv weight, [co, (ky*3+kx)*C + ci]
    # b_ref:    (C, 1)               conv bias
    # out_ref:  (1, 2C, H*W)         rows [0, C) = skip (identity), [C, 2C) = main
    # xpad_ref: (C, pad + H*W + pad) flat zero-padded pixels (VMEM scratch)
    # col_ref:  (9*C, H*W)           im2col buffer (taps folded into K)
    C = x_ref.shape[1]
    HW = x_ref.shape[2]
    W = width
    pad = (xpad_ref.shape[1] - HW) // 2

    # --- in-kernel zero padding (no wrapper jnp.pad / extra HBM pass) --------
    xpad_ref[...] = jnp.zeros_like(xpad_ref)
    xpad_ref[:, pad:pad + HW] = x_ref[0]

    # --- horizontal-border masks (dx = -1 / +1 taps must not wrap rows) ------
    xcoord = jax.lax.broadcasted_iota(jnp.int32, (1, HW), 1) % W
    left_ok = xcoord >= 1            # tap kx = 0 reads column x-1
    right_ok = xcoord <= W - 2       # tap kx = 2 reads column x+1

    # --- im2col: each tap is a shifted 1-D lane window of the flat buffer ----
    for ky in range(3):
        for kx in range(3):
            t = ky * 3 + kx
            s = pad + (ky - 1) * W + (kx - 1)           # window start (static)
            win = xpad_ref[:, s:s + HW]                 # (C, HW)
            if kx == 0:
                win = jnp.where(left_ok, win, jnp.zeros_like(win))
            elif kx == 2:
                win = jnp.where(right_ok, win, jnp.zeros_like(win))
            col_ref[t * C:(t + 1) * C, :] = win

    # --- single MXU matmul, K = 9C, f32 accumulation; bias + ReLU on VPU -----
    acc = jnp.dot(w_ref[...], col_ref[...], preferred_element_type=jnp.float32)
    acc = acc + b_ref[...].astype(jnp.float32)
    main = jnp.maximum(acc, 0.0)

    # --- channel concat == two leading-axis slab stores (no lane shuffle) ----
    out_ref[0, 0:C, :] = x_ref[0]                       # skip branch (identity)
    out_ref[0, C:2 * C, :] = main.astype(out_ref.dtype)  # main branch


def skip_block_forward(x_nchw, w_oihw, b):
    """SkipBlock forward. x: (N,C,H,W); w: (C,C,3,3) OIHW; b: (C,).

    Returns (N, 2C, H, W) == torch.cat([x, relu(conv3x3(x) + b)], dim=1).
    """
    N, C, H, W = x_nchw.shape
    HW = H * W
    pad = _round_up(W + 1, 128)      # aligned zero pad of the flat pixel axis

    # Free, contiguous reshapes + tiny weight reorder (no activation transposes).
    x_flat = x_nchw.reshape(N, C, HW)
    w2 = jnp.transpose(w_oihw, (0, 2, 3, 1)).reshape(C, 9 * C)   # [co, t*C + ci]
    b2 = b.reshape(C, 1)

    itemsize = x_nchw.dtype.itemsize
    raw_bytes = itemsize * (
        2 * C * HW                 # x block (double-buffered)
        + 2 * 2 * C * HW           # out block (double-buffered)
        + 2 * (9 * C * C + C)      # weights + bias (double-buffered)
        + C * (HW + 2 * pad)       # xpad scratch
        + 9 * C * HW)              # im2col scratch
    vmem_limit = int(min(max(4 * raw_bytes, 16 * 2**20), 64 * 2**20))

    out_flat = pl.pallas_call(
        functools.partial(_skipblock_kernel, width=W),
        out_shape=jax.ShapeDtypeStruct((N, 2 * C, HW), x_nchw.dtype),
        grid_spec=pltpu.PrefetchScalarGridSpec(
            num_scalar_prefetch=0,
            grid=(N,),
            in_specs=[
                pl.BlockSpec((1, C, HW), lambda n: (n, 0, 0)),
                pl.BlockSpec((C, 9 * C), lambda n: (0, 0)),
                pl.BlockSpec((C, 1), lambda n: (0, 0)),
            ],
            out_specs=pl.BlockSpec((1, 2 * C, HW), lambda n: (n, 0, 0)),
            scratch_shapes=[
                pltpu.VMEM((C, HW + 2 * pad), x_nchw.dtype),
                pltpu.VMEM((9 * C, HW), x_nchw.dtype),
            ]),
        compiler_params=pltpu.CompilerParams(
            dimension_semantics=("parallel",),
            vmem_limit_bytes=vmem_limit),
    )(x_flat, w2, b2)

    # Contiguous split of the last dim -> free (no HBM transpose pass).
    return out_flat.reshape(N, 2 * C, H, W)


def _reference(x_nchw, w_oihw, b):
    """Pure-JAX reference of the same SkipBlock instantiation."""
    conv = jax.lax.conv_general_dilated(
        x_nchw, w_oihw, window_strides=(1, 1), padding="SAME",
        dimension_numbers=("NCHW", "OIHW", "NCHW"))
    main = jax.nn.relu(conv + b.reshape(1, -1, 1, 1))
    return jnp.concatenate([x_nchw, main], axis=1)


if __name__ == "__main__":
    key = jax.random.PRNGKey(0)
    k_x, k_w, k_b = jax.random.split(key, 3)

    N, C, H, W = 2, 4, 16, 16
    x = jax.random.normal(k_x, (N, C, H, W), dtype=jnp.float32)
    # Deterministic "Conv2d(C, C, 3, padding=1)" parameters (synthetic init).
    w = jax.random.normal(k_w, (C, C, 3, 3), dtype=jnp.float32) * 0.1
    b = jax.random.normal(k_b, (C,), dtype=jnp.float32) * 0.1

    out = skip_block_forward(x, w, b)
    out = jax.block_until_ready(out)

    ref = _reference(x, w, b)
    assert out.shape == (N, 2 * C, H, W), out.shape
    max_err = float(jnp.max(jnp.abs(out - ref)))
    assert jnp.allclose(out, ref, atol=1e-5, rtol=1e-5), max_err

    print("KERNEL_OK")
</pallas_src>

<mosaic_0001>
module attributes {stable_mosaic.version = 11 : i64} {
  func.func @_skipblock_kernel(%arg0: i32, %arg1: memref<1x4x256xf32, #tpu.memory_space<vmem>>, %arg2: memref<4x36xf32, #tpu.memory_space<vmem>>, %arg3: memref<4x1xf32, #tpu.memory_space<vmem>>, %arg4: memref<1x8x256xf32, #tpu.memory_space<vmem>>, %arg5: memref<4x512xf32, #tpu.memory_space<vmem>>, %arg6: memref<36x256xf32, #tpu.memory_space<vmem>>) attributes {dimension_semantics = [#tpu.dimension_semantics<parallel>], iteration_bounds = array<i64: 2>, scalar_prefetch = 0 : i64, scratch_operands = 2 : i64, tpu.core_type = #tpu.core_type<tc>, window_params = [{transform_indices = @transform_0, window_bounds = array<i64: 1, 4, 256>}, {pipeline_mode = #tpu.pipeline_mode<synchronous>, transform_indices = @transform_1, window_bounds = array<i64: 4, 36>}, {pipeline_mode = #tpu.pipeline_mode<synchronous>, transform_indices = @transform_2, window_bounds = array<i64: 4, 1>}, {transform_indices = @transform_3, window_bounds = array<i64: 1, 8, 256>}]} {
    %cst = arith.constant 0.000000e+00 : f32
    %0 = vector.broadcast %cst : f32 to vector<4x512xf32>
    %c0 = arith.constant 0 : index
    %c0_0 = arith.constant 0 : index
    %1 = vector.load %arg5[%c0, %c0_0] : memref<4x512xf32, #tpu.memory_space<vmem>>, vector<4x512xf32>
    tpu.vector_store %arg5[%c0, %c0_0], %0 {strides = array<i32>} : memref<4x512xf32, #tpu.memory_space<vmem>>, vector<4x512xf32>,
    %c0_1 = arith.constant 0 : index
    %c0_2 = arith.constant 0 : index
    %c0_3 = arith.constant 0 : index
    %2 = vector.load %arg1[%c0_1, %c0_2, %c0_3] : memref<1x4x256xf32, #tpu.memory_space<vmem>>, vector<1x4x256xf32>
    %3 = vector.shape_cast %2 : vector<1x4x256xf32> to vector<4x256xf32>
    %c0_4 = arith.constant 0 : index
    %c128 = arith.constant 128 : index
    %4 = vector.load %arg5[%c0_4, %c128] : memref<4x512xf32, #tpu.memory_space<vmem>>, vector<4x256xf32>
    tpu.vector_store %arg5[%c0_4, %c128], %3 {strides = array<i32>} : memref<4x512xf32, #tpu.memory_space<vmem>>, vector<4x256xf32>,
    %5 = tpu.iota {dimensions = array<i32: 1>} : vector<1x256xi32>
    %c16_i32 = arith.constant 16 : i32
    %c0_i32 = arith.constant 0 : i32
    %6 = arith.cmpi eq, %c16_i32, %c0_i32 : i32
    %c1_i32 = arith.constant 1 : i32
    %7 = arith.select %6, %c1_i32, %c16_i32 : i32
    %8 = vector.broadcast %7 : i32 to vector<1x256xi32>
    %9 = arith.remsi %5, %8 : vector<1x256xi32>
    %c0_i32_5 = arith.constant 0 : i32
    %10 = vector.broadcast %c0_i32_5 : i32 to vector<1x256xi32>
    %11 = arith.cmpi ne, %9, %10 : vector<1x256xi32>
    %c0_i32_6 = arith.constant 0 : i32
    %12 = vector.broadcast %c0_i32_6 : i32 to vector<1x256xi32>
    %13 = arith.cmpi slt, %9, %12 : vector<1x256xi32>
    %c0_i32_7 = arith.constant 0 : i32
    %14 = arith.cmpi slt, %7, %c0_i32_7 : i32
    %15 = vector.broadcast %14 : i1 to vector<1x256xi1>
    %16 = vector.broadcast %15 : vector<1x256xi1> to vector<1x256xi1>
    %17 = arith.xori %13, %16 : vector<1x256xi1>
    %18 = arith.andi %17, %11 : vector<1x256xi1>
    %19 = vector.broadcast %7 : i32 to vector<1x256xi32>
    %20 = arith.addi %9, %19 : vector<1x256xi32>
    %21 = arith.select %18, %20, %9 : vector<1x256xi1>, vector<1x256xi32>
    %c1_i32_8 = arith.constant 1 : i32
    %22 = vector.broadcast %c1_i32_8 : i32 to vector<1x256xi32>
    %23 = arith.cmpi sge, %21, %22 : vector<1x256xi32>
    %c14_i32 = arith.constant 14 : i32
    %24 = vector.broadcast %c14_i32 : i32 to vector<1x256xi32>
    %25 = arith.cmpi sle, %21, %24 : vector<1x256xi32>
    %c0_9 = arith.constant 0 : index
    %c111 = arith.constant 111 : index
    %26 = vector.load %arg5[%c0_9, %c111] : memref<4x512xf32, #tpu.memory_space<vmem>>, vector<4x256xf32>
    %cst_10 = arith.constant 0.000000e+00 : f32
    %27 = vector.broadcast %cst_10 : f32 to vector<4x256xf32>
    %28 = vector.shape_cast %23 : vector<1x256xi1> to vector<1x256xi1>
    %29 = vector.broadcast %28 : vector<1x256xi1> to vector<4x256xi1>
    %30 = arith.select %29, %26, %27 : vector<4x256xi1>, vector<4x256xf32>
    %c0_11 = arith.constant 0 : index
    %c0_12 = arith.constant 0 : index
    %31 = vector.load %arg6[%c0_11, %c0_12] : memref<36x256xf32, #tpu.memory_space<vmem>>, vector<4x256xf32>
    tpu.vector_store %arg6[%c0_11, %c0_12], %30 {strides = array<i32>} : memref<36x256xf32, #tpu.memory_space<vmem>>, vector<4x256xf32>,
    %c0_13 = arith.constant 0 : index
    %c112 = arith.constant 112 : index
    %32 = vector.load %arg5[%c0_13, %c112] : memref<4x512xf32, #tpu.memory_space<vmem>>, vector<4x256xf32>
    %c4 = arith.constant 4 : index
    %c0_14 = arith.constant 0 : index
    %33 = vector.load %arg6[%c4, %c0_14] : memref<36x256xf32, #tpu.memory_space<vmem>>, vector<4x256xf32>
    tpu.vector_store %arg6[%c4, %c0_14], %32 {strides = array<i32>} : memref<36x256xf32, #tpu.memory_space<vmem>>, vector<4x256xf32>,
    %c0_15 = arith.constant 0 : index
    %c113 = arith.constant 113 : index
    %34 = vector.load %arg5[%c0_15, %c113] : memref<4x512xf32, #tpu.memory_space<vmem>>, vector<4x256xf32>
    %cst_16 = arith.constant 0.000000e+00 : f32
    %35 = vector.broadcast %cst_16 : f32 to vector<4x256xf32>
    %36 = vector.shape_cast %25 : vector<1x256xi1> to vector<1x256xi1>
    %37 = vector.broadcast %36 : vector<1x256xi1> to vector<4x256xi1>
    %38 = arith.select %37, %34, %35 : vector<4x256xi1>, vector<4x256xf32>
    %c8 = arith.constant 8 : index
    %c0_17 = arith.constant 0 : index
    %39 = vector.load %arg6[%c8, %c0_17] : memref<36x256xf32, #tpu.memory_space<vmem>>, vector<4x256xf32>
    tpu.vector_store %arg6[%c8, %c0_17], %38 {strides = array<i32>} : memref<36x256xf32, #tpu.memory_space<vmem>>, vector<4x256xf32>,
    %c0_18 = arith.constant 0 : index
    %c127 = arith.constant 127 : index
    %40 = vector.load %arg5[%c0_18, %c127] : memref<4x512xf32, #tpu.memory_space<vmem>>, vector<4x256xf32>
    %cst_19 = arith.constant 0.000000e+00 : f32
    %41 = vector.broadcast %cst_19 : f32 to vector<4x256xf32>
    %42 = vector.shape_cast %23 : vector<1x256xi1> to vector<1x256xi1>
    %43 = vector.broadcast %42 : vector<1x256xi1> to vector<4x256xi1>
    %44 = arith.select %43, %40, %41 : vector<4x256xi1>, vector<4x256xf32>
    %c12 = arith.constant 12 : index
    %c0_20 = arith.constant 0 : index
    %45 = vector.load %arg6[%c12, %c0_20] : memref<36x256xf32, #tpu.memory_space<vmem>>, vector<4x256xf32>
    tpu.vector_store %arg6[%c12, %c0_20], %44 {strides = array<i32>} : memref<36x256xf32, #tpu.memory_space<vmem>>, vector<4x256xf32>,
    %c0_21 = arith.constant 0 : index
    %c128_22 = arith.constant 128 : index
    %46 = vector.load %arg5[%c0_21, %c128_22] : memref<4x512xf32, #tpu.memory_space<vmem>>, vector<4x256xf32>
    %c16 = arith.constant 16 : index
    %c0_23 = arith.constant 0 : index
    %47 = vector.load %arg6[%c16, %c0_23] : memref<36x256xf32, #tpu.memory_space<vmem>>, vector<4x256xf32>
    tpu.vector_store %arg6[%c16, %c0_23], %46 {strides = array<i32>} : memref<36x256xf32, #tpu.memory_space<vmem>>, vector<4x256xf32>,
    %c0_24 = arith.constant 0 : index
    %c129 = arith.constant 129 : index
    %48 = vector.load %arg5[%c0_24, %c129] : memref<4x512xf32, #tpu.memory_space<vmem>>, vector<4x256xf32>
    %cst_25 = arith.constant 0.000000e+00 : f32
    %49 = vector.broadcast %cst_25 : f32 to vector<4x256xf32>
    %50 = vector.shape_cast %25 : vector<1x256xi1> to vector<1x256xi1>
    %51 = vector.broadcast %50 : vector<1x256xi1> to vector<4x256xi1>
    %52 = arith.select %51, %48, %49 : vector<4x256xi1>, vector<4x256xf32>
    %c20 = arith.constant 20 : index
    %c0_26 = arith.constant 0 : index
    %53 = vector.load %arg6[%c20, %c0_26] : memref<36x256xf32, #tpu.memory_space<vmem>>, vector<4x256xf32>
    tpu.vector_store %arg6[%c20, %c0_26], %52 {strides = array<i32>} : memref<36x256xf32, #tpu.memory_space<vmem>>, vector<4x256xf32>,
    %c0_27 = arith.constant 0 : index
    %c143 = arith.constant 143 : index
    %54 = vector.load %arg5[%c0_27, %c143] : memref<4x512xf32, #tpu.memory_space<vmem>>, vector<4x256xf32>
    %cst_28 = arith.constant 0.000000e+00 : f32
    %55 = vector.broadcast %cst_28 : f32 to vector<4x256xf32>
    %56 = vector.shape_cast %23 : vector<1x256xi1> to vector<1x256xi1>
    %57 = vector.broadcast %56 : vector<1x256xi1> to vector<4x256xi1>
    %58 = arith.select %57, %54, %55 : vector<4x256xi1>, vector<4x256xf32>
    %c24 = arith.constant 24 : index
    %c0_29 = arith.constant 0 : index
    %59 = vector.load %arg6[%c24, %c0_29] : memref<36x256xf32, #tpu.memory_space<vmem>>, vector<4x256xf32>
    tpu.vector_store %arg6[%c24, %c0_29], %58 {strides = array<i32>} : memref<36x256xf32, #tpu.memory_space<vmem>>, vector<4x256xf32>,
    %c0_30 = arith.constant 0 : index
    %c144 = arith.constant 144 : index
    %60 = vector.load %arg5[%c0_30, %c144] : memref<4x512xf32, #tpu.memory_space<vmem>>, vector<4x256xf32>
    %c28 = arith.constant 28 : index
    %c0_31 = arith.constant 0 : index
    %61 = vector.load %arg6[%c28, %c0_31] : memref<36x256xf32, #tpu.memory_space<vmem>>, vector<4x256xf32>
    tpu.vector_store %arg6[%c28, %c0_31], %60 {strides = array<i32>} : memref<36x256xf32, #tpu.memory_space<vmem>>, vector<4x256xf32>,
    %c0_32 = arith.constant 0 : index
    %c145 = arith.constant 145 : index
    %62 = vector.load %arg5[%c0_32, %c145] : memref<4x512xf32, #tpu.memory_space<vmem>>, vector<4x256xf32>
    %cst_33 = arith.constant 0.000000e+00 : f32
    %63 = vector.broadcast %cst_33 : f32 to vector<4x256xf32>
    %64 = vector.shape_cast %25 : vector<1x256xi1> to vector<1x256xi1>
    %65 = vector.broadcast %64 : vector<1x256xi1> to vector<4x256xi1>
    %66 = arith.select %65, %62, %63 : vector<4x256xi1>, vector<4x256xf32>
    %c32 = arith.constant 32 : index
    %c0_34 = arith.constant 0 : index
    %67 = vector.load %arg6[%c32, %c0_34] : memref<36x256xf32, #tpu.memory_space<vmem>>, vector<4x256xf32>
    tpu.vector_store %arg6[%c32, %c0_34], %66 {strides = array<i32>} : memref<36x256xf32, #tpu.memory_space<vmem>>, vector<4x256xf32>,
    %c0_35 = arith.constant 0 : index
    %c0_36 = arith.constant 0 : index
    %68 = vector.load %arg2[%c0_35, %c0_36] : memref<4x36xf32, #tpu.memory_space<vmem>>, vector<4x36xf32>
    %c0_37 = arith.constant 0 : index
    %c0_38 = arith.constant 0 : index
    %69 = vector.load %arg6[%c0_37, %c0_38] : memref<36x256xf32, #tpu.memory_space<vmem>>, vector<36x256xf32>
    %cst_39 = arith.constant dense<0.000000e+00> : vector<4x256xf32>
    %70 = tpu.matmul %68, %69, %cst_39 {dimension_numbers = #tpu.dot_dimension_numbers<[1], [0], [0], [1], [0, 0, 1, 1], [], []>} : vector<4x36xf32>, vector<36x256xf32>, vector<4x256xf32> -> vector<4x256xf32>
    %c0_40 = arith.constant 0 : index
    %c0_41 = arith.constant 0 : index
    %71 = vector.load %arg3[%c0_40, %c0_41] : memref<4x1xf32, #tpu.memory_space<vmem>>, vector<4x1xf32>
    %72 = vector.broadcast %71 : vector<4x1xf32> to vector<4x256xf32>
    %73 = arith.addf %70, %72 : vector<4x256xf32>
    %cst_42 = arith.constant 0.000000e+00 : f32
    %74 = vector.broadcast %cst_42 : f32 to vector<4x256xf32>
    %75 = arith.maximumf %73, %74 : vector<4x256xf32>
    %c0_43 = arith.constant 0 : index
    %c0_44 = arith.constant 0 : index
    %c0_45 = arith.constant 0 : index
    %76 = vector.load %arg1[%c0_43, %c0_44, %c0_45] : memref<1x4x256xf32, #tpu.memory_space<vmem>>, vector<1x4x256xf32>
    %77 = vector.shape_cast %76 : vector<1x4x256xf32> to vector<4x256xf32>
    %c0_46 = arith.constant 0 : index
    %c0_47 = arith.constant 0 : index
    %c0_48 = arith.constant 0 : index
    %78 = vector.load %arg4[%c0_46, %c0_47, %c0_48] : memref<1x8x256xf32, #tpu.memory_space<vmem>>, vector<1x4x256xf32>
    %79 = vector.shape_cast %78 : vector<1x4x256xf32> to vector<4x256xf32>
    %80 = vector.shape_cast %77 : vector<4x256xf32> to vector<1x4x256xf32>
    tpu.vector_store %arg4[%c0_46, %c0_47, %c0_48], %80 {strides = array<i32>} : memref<1x8x256xf32, #tpu.memory_space<vmem>>, vector<1x4x256xf32>,
    %c0_49 = arith.constant 0 : index
    %c4_50 = arith.constant 4 : index
    %c0_51 = arith.constant 0 : index
    %81 = vector.load %arg4[%c0_49, %c4_50, %c0_51] : memref<1x8x256xf32, #tpu.memory_space<vmem>>, vector<1x4x256xf32>
    %82 = vector.shape_cast %81 : vector<1x4x256xf32> to vector<4x256xf32>
    %83 = vector.shape_cast %75 : vector<4x256xf32> to vector<1x4x256xf32>
    tpu.vector_store %arg4[%c0_49, %c4_50, %c0_51], %83 {strides = array<i32>} : memref<1x8x256xf32, #tpu.memory_space<vmem>>, vector<1x4x256xf32>,
    return
  }
  func.func @transform_0(%arg0: i32) -> (i32, i32, i32) {
    %c0_i32 = arith.constant 0 : i32
    %c0_i32_0 = arith.constant 0 : i32
    %c0_i32_1 = arith.constant 0 : i32
    return %arg0, %c0_i32, %c0_i32_0 : i32, i32, i32
  }
  func.func @transform_1(%arg0: i32) -> (i32, i32) {
    %c0_i32 = arith.constant 0 : i32
    %c0_i32_0 = arith.constant 0 : i32
    %c0_i32_1 = arith.constant 0 : i32
    return %c0_i32, %c0_i32_0 : i32, i32
  }
  func.func @transform_2(%arg0: i32) -> (i32, i32) {
    %c0_i32 = arith.constant 0 : i32
    %c0_i32_0 = arith.constant 0 : i32
    %c0_i32_1 = arith.constant 0 : i32
    return %c0_i32, %c0_i32_0 : i32, i32
  }
  func.func @transform_3(%arg0: i32) -> (i32, i32, i32) {
    %c0_i32 = arith.constant 0 : i32
    %c0_i32_0 = arith.constant 0 : i32
    %c0_i32_1 = arith.constant 0 : i32
    return %arg0, %c0_i32, %c0_i32_0 : i32, i32, i32
  }
}

</mosaic_0001>

<llo_original>
// kernel: tpu_custom_call.1
$region0: #{tpu_custom_call.1}
  #allocation0 [shape = 'u32[]', space=smem, size = 0x4, offset = 0x4, fixed_abs, tag = 'smem constant byte address 0x4 - core index']
  #allocation1 [shape = 'u32[144,128]{1,0:T(1,128)}', space=vmem, size = 0x12000, scoped, tag = 'internal scratch']
  #allocation2 [shape = 'f32[4,512]{1,0:T(4,128)}', space=vmem, size = 0x2000, scoped, tag = 'scratch operand']
  #allocation3 [shape = 'f32[36,256]{1,0:T(8,128)}', space=vmem, size = 0xa000, scoped, tag = 'scratch operand']
  %s0 = inlined_call_operand.hbm [shape: f32[2,4,256], index: 0, kind: input, shape index: {}]
  %s1 = inlined_call_operand.vmem [shape: f32[4,36], index: 1, kind: input, shape index: {}]
  %s2 = inlined_call_operand.vmem [shape: f32[4,1], index: 2, kind: input, shape index: {}]
  %s3 = inlined_call_operand.hbm [shape: f32[2,8,256], index: 3, kind: output, shape index: {}]
  %s4 = sld [smem:[#allocation0]]
  $region49: #{tpu_custom_call.1} parent=0
    _
  %s6 = ssub.s32 1, %s4
  %s7 = scalar_select 0, %s6, %s4
  $region1: #{tpu_custom_call.1} parent=0
    #allocation4 [shape = 'u8[8192]{0}', space=vmem, size = 0x2000, scoped, tag = 'input window, operand 0']
    #allocation5 [shape = 's32[2]{0}', space=sflag, size = 0x8, scoped, tag = 'scoped memory for tpu_custom_call.1']
    #allocation6 [shape = 's32[2]{0}', space=sflag, size = 0x8, scoped, tag = 'scoped memory for tpu_custom_call.1']
    #allocation7 [shape = 'u8[16384]{0}', space=vmem, size = 0x4000, scoped, tag = 'output window, operand 0']
    %8 = vsyncpa [#allocation5], 0
    %s9 = scalar_lea.sflag [#allocation5], 1
    %10 = vsyncpa %s9, 0
    %11 = vsyncpa [#allocation6], 0
    %s12 = scalar_lea.sflag [#allocation6], 1
    %13 = vsyncpa %s12, 0
    loop: start=0, step=1, limit=4
    $region2: #{tpu_custom_call.1} parent=1 // loop_pre_header
      _
    $region3: #{tpu_custom_call.1} parent=1 // loop_header
      %s15 = sphi 0, %s19
      %p16 = scmp.ge.s32.totalorder %s15, 4
      %s25 = sphi 0, %s27
      %s28 = sphi 0, %s25
      %s29 = sphi 0, %s28
      %s45 = sphi 0, %s29
      %s49 = sphi 0, %s49
      %s51 = sphi 0, %s49
      %s52 = sphi 0, %s51
      %s66 = sphi 0, %s52
      %s70 = sphi 0, %s70
      %s72 = sphi 0, %s70
      %s73 = sphi 0, %s72
      %s87 = sphi 0, %s73
      %s93 = sphi 0, %s95
      %s96 = sphi 0, %s93
      %s97 = sphi 0, %s96
      %s113 = sphi 0, %s97
    $region4: #{tpu_custom_call.1} parent=1 // loop_header_branch
      %18 = sbr.rel (%p16) target = $region8
    $region5: #{tpu_custom_call.1} parent=1 // loop_body
      %s20 = ssub.s32 %s15, 1
      %s21 = ssub.s32 %s15, 2
      %s22 = sadd.s32 %s15, 1
      %s23 = ssub.s32 %s15, %s22
      %p24 = scmp.eq.s32.totalorder %s23, 0
      %s26 = sadd.s32 %s25, 1
      %s27 = scalar_select %p24, %s25, %s26
      %p30 = pneg %p24
      %p31 = scmp.eq.s32.totalorder %s15, 1
      %p32 = por %p30, %p31
      %p33 = scmp.ne.s32.totalorder %s25, %s28
      %p34 = scmp.eq.s32.totalorder %s15, 0
      %p35 = por %p33, %p34
      %p36 = scmp.ne.s32.totalorder %s25, %s28
      %p37 = scmp.eq.s32.totalorder %s20, 1
      %p38 = por %p36, %p37
      %p39 = scmp.ne.s32.totalorder %s28, %s29
      %p40 = scmp.eq.s32.totalorder %s20, 0
      %p41 = por %p39, %p40
      %p42 = scmp.ne.s32.totalorder %s28, %s29
      %p43 = scmp.eq.s32.totalorder %s21, 1
      %p44 = por %p42, %p43
      %p46 = scmp.ne.s32.totalorder %s29, %s45
      %p47 = scmp.eq.s32.totalorder %s21, 0
      %p48 = por %p46, %p47
      %s50 = sadd.s32 %s49, 1
      %p53 = scmp.eq.s32.totalorder %s15, 1
      %p54 = scmp.ne.s32.totalorder %s49, %s51
      %p55 = scmp.eq.s32.totalorder %s15, 0
      %p56 = por %p54, %p55
      %p57 = scmp.ne.s32.totalorder %s49, %s51
      %p58 = scmp.eq.s32.totalorder %s20, 1
      %p59 = por %p57, %p58
      %p60 = scmp.ne.s32.totalorder %s51, %s52
      %p61 = scmp.eq.s32.totalorder %s20, 0
      %p62 = por %p60, %p61
      %p63 = scmp.ne.s32.totalorder %s51, %s52
      %p64 = scmp.eq.s32.totalorder %s21, 1
      %p65 = por %p63, %p64
      %p67 = scmp.ne.s32.totalorder %s52, %s66
      %p68 = scmp.eq.s32.totalorder %s21, 0
      %p69 = por %p67, %p68
      %s71 = sadd.s32 %s70, 1
      %p74 = scmp.eq.s32.totalorder %s15, 1
      %p75 = scmp.ne.s32.totalorder %s70, %s72
      %p76 = scmp.eq.s32.totalorder %s15, 0
      %p77 = por %p75, %p76
      %p78 = scmp.ne.s32.totalorder %s70, %s72
      %p79 = scmp.eq.s32.totalorder %s20, 1
      %p80 = por %p78, %p79
      %p81 = scmp.ne.s32.totalorder %s72, %s73
      %p82 = scmp.eq.s32.totalorder %s20, 0
      %p83 = por %p81, %p82
      %p84 = scmp.ne.s32.totalorder %s72, %s73
      %p85 = scmp.eq.s32.totalorder %s21, 1
      %p86 = por %p84, %p85
      %p88 = scmp.ne.s32.totalorder %s73, %s87
      %p89 = scmp.eq.s32.totalorder %s21, 0
      %p90 = por %p88, %p89
      %s91 = ssub.s32 %s15, %s22
      %p92 = scmp.eq.s32.totalorder %s91, 0
      %s94 = sadd.s32 %s93, 1
      %s95 = scalar_select %p92, %s93, %s94
      %p98 = pneg %p92
      %p99 = scmp.eq.s32.totalorder %s15, 1
      %p100 = por %p98, %p99
      %p101 = scmp.ne.s32.totalorder %s93, %s96
      %p102 = scmp.eq.s32.totalorder %s15, 0
      %p103 = por %p101, %p102
      %p104 = scmp.ne.s32.totalorder %s93, %s96
      %p105 = scmp.eq.s32.totalorder %s20, 1
      %p106 = por %p104, %p105
      %p107 = scmp.ne.s32.totalorder %s96, %s97
      %p108 = scmp.eq.s32.totalorder %s20, 0
      %p109 = por %p107, %p108
      %p110 = scmp.ne.s32.totalorder %s96, %s97
      %p111 = scmp.eq.s32.totalorder %s21, 1
      %p112 = por %p110, %p111
      %p114 = scmp.ne.s32.totalorder %s97, %s113
      %p115 = scmp.eq.s32.totalorder %s21, 0
      %p116 = por %p114, %p115
      %p117 = scmp.le.s32.totalorder 1, %s15
      %p118 = scmp.lt.s32.totalorder %s15, 3
      %p119 = pnand %p117, %p118
      %p120 = pneg %p119
      // Predicated region
      $region9: #{tpu_custom_call.1} parent=5 // pred_check
        _
      $region10: #{tpu_custom_call.1} parent=5 // pred_check_branch
        %122 = sbr.rel (%p119) target = $region12
      $region11: #{tpu_custom_call.1} parent=5 // pred_region
        %s123 = ssub.s32 %s15, 1
        // Predicated region
        $region13: #{tpu_custom_call.1} parent=11 // pred_check
          %p124 = pneg %p62
        $region14: #{tpu_custom_call.1} parent=11 // pred_check_branch
          %126 = sbr.rel (%p124) target = $region16
        $region15: #{tpu_custom_call.1} parent=11 // pred_region
          _
        $region16: #{tpu_custom_call.1} parent=11 // pred_fallthru
          _
        // Predicated region
        $region17: #{tpu_custom_call.1} parent=11 // pred_check
          %p127 = pneg %p83
        $region18: #{tpu_custom_call.1} parent=11 // pred_check_branch
          %129 = sbr.rel (%p127) target = $region20
        $region19: #{tpu_custom_call.1} parent=11 // pred_region
          _
        $region20: #{tpu_custom_call.1} parent=11 // pred_fallthru
          _
      $region12: #{tpu_custom_call.1} parent=5 // pred_fallthru
        _
      %p130 = scmp.lt.s32.totalorder %s15, 2
      // Predicated region
      $region21: #{tpu_custom_call.1} parent=5 // pred_check
        %p131 = pneg %p130
      $region22: #{tpu_custom_call.1} parent=5 // pred_check_branch
        %133 = sbr.rel (%p131) target = $region24
      $region23: #{tpu_custom_call.1} parent=5 // pred_region
        // Predicated region
        $region25: #{tpu_custom_call.1} parent=23 // pred_check
          %p134 = pneg %p35
        $region26: #{tpu_custom_call.1} parent=23 // pred_check_branch
          %136 = sbr.rel (%p134) target = $region28
        $region27: #{tpu_custom_call.1} parent=23 // pred_region
          %s137 = sand.u32 %s25, 1
          %s138 = scalar_lea.sflag [#allocation5], %s137
          %s139 = sand.u32 %s25, 1
          %s140 = smul.addr %s139, 8
          %s141 = scalar_lea.vmem [#allocation4], %s140
          %s143 = ssub.s32 128, 128
          %144 = vsyncadd %s138, %s143
          %s145 = smul.addr %s15, 2
          %s146 = smul.addr %s145, 64
          %s147 = scalar_lea.hbm %s0, %s146
          %s149 = sshll.u32 %s141, 4
          %s150 = int_to_ptr.vmem [resolvable:$true] %s149
          %152 = dma.hbm_to_vmem [thread:$0]  %s147, 128, %s150, %s138
        $region28: #{tpu_custom_call.1} parent=23 // pred_fallthru
          _
      $region24: #{tpu_custom_call.1} parent=5 // pred_fallthru
        _
      %p153 = scmp.le.s32.totalorder 1, %s15
      %p154 = scmp.lt.s32.totalorder %s15, 3
      %p155 = pnand %p153, %p154
      %p156 = pneg %p155
      // Predicated region
      $region29: #{tpu_custom_call.1} parent=5 // pred_check
        _
      $region30: #{tpu_custom_call.1} parent=5 // pred_check_branch
        %158 = sbr.rel (%p155) target = $region32
      $region31: #{tpu_custom_call.1} parent=5 // pred_region
        %s159 = ssub.s32 %s15, 1
        %s160 = sand.u32 %s28, 1
        %s161 = scalar_lea.sflag [#allocation5], %s160
        %s162 = sand.u32 %s28, 1
        %s163 = smul.addr %s162, 8
        %s164 = scalar_lea.vmem [#allocation4], %s163
        // Predicated region
        $region33: #{tpu_custom_call.1} parent=31 // pred_check
          %p165 = pneg %p41
        $region34: #{tpu_custom_call.1} parent=31 // pred_check_branch
          %167 = sbr.rel (%p165) target = $region36
        $region35: #{tpu_custom_call.1} parent=31 // pred_region
          %168 = dma.done %s161, 128
        $region36: #{tpu_custom_call.1} parent=31 // pred_fallthru
          _
        %s169 = sand.u32 %s28, 1
        %s170 = scalar_lea.sflag [#allocation5], %s169
        %s171 = sand.u32 %s28, 1
        %s172 = smul.addr %s171, 8
        %s173 = scalar_lea.vmem [#allocation4], %s172
        %p174 = pneg %p41
        %p175 = pneg %p38
        %p176 = pneg %p62
        %p177 = pneg %p59
        %p178 = pneg %p83
        %p179 = pneg %p80
        %p180 = pneg %p109
        %p181 = pneg %p106
        %s182 = sand.u32 %s96, 1
        %s183 = scalar_lea.sflag [#allocation6], %s182
        %s184 = sand.u32 %s96, 1
        %s185 = smul.addr %s184, 16
        %s186 = scalar_lea.vmem [#allocation7], %s185
        %187 = vst [vmem:[#allocation2] sm:$0xff] 0.0
        %188 = vst [vmem:[#allocation2 + $0x8] sm:$0xff] 0.0
        %v189 = vld [vmem:[%s164] sm:$0xff]
        %190 = vst [vmem:[#allocation2 + $0x4] sm:$0xff] %v189
        %v191 = vlaneseq
        %v192 = vand.u32 %v191, 127
        %v193 = vadd.s32 %v192, 128
        %vm194 = vcmp.lt.s32.totalorder %v192, 0
        %v195 = vsub.s32 0, %v192
        %v196 = vsel %vm194, %v195, %v192
        %v197 = vshrl.u32 %v196, 4
        %v198 = vand.u32 %v196, 15
        %v199 = vsub.s32 0, %v198
        %v200 = vsel %vm194, %v199, %v198
        %vm201 = vcmp.lt.s32.totalorder %v193, 0
        %v202 = vsub.s32 0, %v193
        %v203 = vsel %vm201, %v202, %v193
        %v204 = vshrl.u32 %v203, 4
        %v205 = vand.u32 %v203, 15
        %v206 = vsub.s32 0, %v205
        %v207 = vsel %vm201, %v206, %v205
        %vm208 = vcmp.ne.s32.totalorder %v200, 0
        %vm209 = vcmp.ne.s32.totalorder %v207, 0
        %vm210 = vcmp.lt.s32.totalorder %v200, 0
        %vm211 = vcmp.lt.s32.totalorder %v207, 0
        %vm212 = vmand %vm210, %vm208
        %vm213 = vmand %vm211, %vm209
        %v214 = vadd.s32 %v200, 16
        %v215 = vadd.s32 %v207, 16
        %v216 = vsel %vm212, %v214, %v200
        %v217 = vsel %vm213, %v215, %v207
        %vm218 = vcmp.ge.s32.totalorder %v216, 1
        %vm219 = vcmp.ge.s32.totalorder %v217, 1
        %vm220 = vcmp.le.s32.totalorder %v216, 14
        %vm221 = vcmp.le.s32.totalorder %v217, 14
        %v222 = vld [vmem:[#allocation2] sm:$0xff]
        %v223 = vld [vmem:[#allocation2 + $0x8] sm:$0xf]
        %v224 = vsel %vm218, 1, 0
        %v225 = vsel %vm219, 1, 0
        %vm226 = vcmp.eq.s32.totalorder %v224, 1
        %vm227 = vcmp.eq.s32.totalorder %v225, 1
        %v230 = vcombine.high %v222, %v222
        %231 = vrot.lane.b32.xlu0 %v222, 17
        %v232 = vpop.permute.xlu0 %231
        %233 = vrot.lane.b32.xlu0 %v230, 17
        %v234 = vpop.permute.xlu0 %233
        %235 = vrot.lane.b32.xlu0 %v223, 17
        %v236 = vpop.permute.xlu0 %235
        %vm237 = vcmask 138240
        %v238 = vsel %vm237, %v232, %v234
        %v239 = vsel %vm237, %v234, %v236
        %v242 = vsel %vm226, %v238, 0.0
        %v243 = vsel %vm227, %v239, 0.0
        %244 = vst [vmem:[#allocation3] sm:$0xf] %v242
        %245 = vst [vmem:[#allocation3 + $0x8] sm:$0xf] %v243
        %v246 = vld [vmem:[#allocation2] sm:$0xff]
        %v247 = vld [vmem:[#allocation2 + $0x8] sm:$0xf]
        %v250 = vcombine.low %v246, %v246
        %v251 = vcombine.low %v247, %v247
        %252 = vrot.lane.b32.xlu0 %v250, 16
        %v253 = vpop.permute.xlu0 %252
        %254 = vrot.lane.b32.xlu0 %v246, 16
        %v255 = vpop.permute.xlu0 %254
        %256 = vrot.lane.b32.xlu0 %v251, 16
        %v257 = vpop.permute.xlu0 %256
        %vm258 = vcmask 130048
        %v259 = vsel %vm258, %v253, %v255
        %v260 = vsel %vm258, %v255, %v257
        %263 = vst [vmem:[#allocation3] sm:$0xf0] %v259
        %264 = vst [vmem:[#allocation3 + $0x8] sm:$0xf0] %v260
        %v265 = vld [vmem:[#allocation2] sm:$0xff]
        %v266 = vld [vmem:[#allocation2 + $0x8] sm:$0xf]
        %v267 = vsel %vm220, 1, 0
        %v268 = vsel %vm221, 1, 0
        %vm269 = vcmp.eq.s32.totalorder %v267, 1
        %vm270 = vcmp.eq.s32.totalorder %v268, 1
        %v273 = vcombine.high %v265, %v265
        %274 = vrot.lane.b32.xlu0 %v265, 15
        %v275 = vpop.permute.xlu0 %274
        %276 = vrot.lane.b32.xlu0 %v273, 15
        %v277 = vpop.permute.xlu0 %276
        %278 = vrot.lane.b32.xlu0 %v266, 15
        %v279 = vpop.permute.xlu0 %278
        %vm280 = vcmask 121856
        %v281 = vsel %vm280, %v275, %v277
        %v282 = vsel %vm280, %v277, %v279
        %v285 = vsel %vm269, %v281, 0.0
        %v286 = vsel %vm270, %v282, 0.0
        %287 = vst [vmem:[#allocation3 + $0x10] sm:$0xf] %v285
        %288 = vst [vmem:[#allocation3 + $0x18] sm:$0xf] %v286
        %v289 = vld [vmem:[#allocation2] sm:$0xff]
        %v290 = vld [vmem:[#allocation2 + $0x8] sm:$0xf]
        %v293 = vcombine.high %v289, %v289
        %294 = vrot.lane.b32.xlu0 %v289, 1
        %v295 = vpop.permute.xlu0 %294
        %296 = vrot.lane.b32.xlu0 %v293, 1
        %v297 = vpop.permute.xlu0 %296
        %298 = vrot.lane.b32.xlu0 %v290, 1
        %v299 = vpop.permute.xlu0 %298
        %vm300 = vcmask 7168
        %v301 = vsel %vm300, %v295, %v297
        %v302 = vsel %vm300, %v297, %v299
        %v305 = vsel %vm226, %v301, 0.0
        %v306 = vsel %vm227, %v302, 0.0
        %v309 = vrot.slane %v305, 4
        %v310 = vrot.slane %v306, 4
        %313 = vst [vmem:[#allocation3 + $0x10] sm:$0xf0] %v309
        %314 = vst [vmem:[#allocation3 + $0x18] sm:$0xf0] %v310
        %v315 = vld [vmem:[#allocation2 + $0x4] sm:$0xff]
        %v317 = vcombine.high %v315, %v315
        %319 = vst [vmem:[#allocation3 + $0x20] sm:$0xf] %v315
        %320 = vst [vmem:[#allocation3 + $0x28] sm:$0xf] %v317
        %v321 = vld [vmem:[#allocation2 + $0x4] sm:$0xff]
        %v322 = vld [vmem:[#allocation2 + $0xc] sm:$0xf]
        %v325 = vcombine.high %v321, %v321
        %326 = vrot.lane.b32.xlu0 %v321, 127
        %v327 = vpop.permute.xlu0 %326
        %328 = vrot.lane.b32.xlu0 %v325, 127
        %v329 = vpop.permute.xlu0 %328
        %330 = vrot.lane.b32.xlu0 %v322, 127
        %v331 = vpop.permute.xlu0 %330
        %vm332 = vcmask 1039360
        %v333 = vsel %vm332, %v327, %v329
        %v334 = vsel %vm332, %v329, %v331
        %v337 = vsel %vm269, %v333, 0.0
        %v338 = vsel %vm270, %v334, 0.0
        %v341 = vrot.slane %v337, 4
        %v342 = vrot.slane %v338, 4
        %345 = vst [vmem:[#allocation3 + $0x20] sm:$0xf0] %v341
        %346 = vst [vmem:[#allocation3 + $0x28] sm:$0xf0] %v342
        %v347 = vld [vmem:[#allocation2 + $0x4] sm:$0xff]
        %v348 = vld [vmem:[#allocation2 + $0xc] sm:$0xf]
        %v351 = vcombine.high %v347, %v347
        %352 = vrot.lane.b32.xlu0 %v347, 113
        %v353 = vpop.permute.xlu0 %352
        %354 = vrot.lane.b32.xlu0 %v351, 113
        %v355 = vpop.permute.xlu0 %354
        %356 = vrot.lane.b32.xlu0 %v348, 113
        %v357 = vpop.permute.xlu0 %356
        %vm358 = vcmask 924672
        %v359 = vsel %vm358, %v353, %v355
        %v360 = vsel %vm358, %v355, %v357
        %v363 = vsel %vm226, %v359, 0.0
        %v364 = vsel %vm227, %v360, 0.0
        %365 = vst [vmem:[#allocation3 + $0x30] sm:$0xf] %v363
        %366 = vst [vmem:[#allocation3 + $0x38] sm:$0xf] %v364
        %v367 = vld [vmem:[#allocation2 + $0x4] sm:$0xff]
        %v368 = vld [vmem:[#allocation2 + $0xc] sm:$0xf]
        %v371 = vcombine.low %v367, %v367
        %v372 = vcombine.low %v368, %v368
        %373 = vrot.lane.b32.xlu0 %v371, 112
        %v374 = vpop.permute.xlu0 %373
        %375 = vrot.lane.b32.xlu0 %v367, 112
        %v376 = vpop.permute.xlu0 %375
        %377 = vrot.lane.b32.xlu0 %v372, 112
        %v378 = vpop.permute.xlu0 %377
        %vm379 = vcmask 916480
        %v380 = vsel %vm379, %v374, %v376
        %v381 = vsel %vm379, %v376, %v378
        %384 = vst [vmem:[#allocation3 + $0x30] sm:$0xf0] %v380
        %385 = vst [vmem:[#allocation3 + $0x38] sm:$0xf0] %v381
        %v386 = vld [vmem:[#allocation2 + $0x4] sm:$0xff]
        %v387 = vld [vmem:[#allocation2 + $0xc] sm:$0xf]
        %v390 = vcombine.high %v386, %v386
        %391 = vrot.lane.b32.xlu0 %v386, 111
        %v392 = vpop.permute.xlu0 %391
        %393 = vrot.lane.b32.xlu0 %v390, 111
        %v394 = vpop.permute.xlu0 %393
        %395 = vrot.lane.b32.xlu0 %v387, 111
        %v396 = vpop.permute.xlu0 %395
        %vm397 = vcmask 908288
        %v398 = vsel %vm397, %v392, %v394
        %v399 = vsel %vm397, %v394, %v396
        %v402 = vsel %vm269, %v398, 0.0
        %v403 = vsel %vm270, %v399, 0.0
        %404 = vst [vmem:[#allocation3 + $0x40] sm:$0xf] %v402
        %405 = vst [vmem:[#allocation3 + $0x48] sm:$0xf] %v403
        %v406 = vld [vmem:[%s1] sm:$0xf]
        %v407 = vld [vmem:[#allocation3] sm:$0xff]
        %v408 = vld [vmem:[#allocation3 + $0x8] sm:$0xff]
        %v409 = vld [vmem:[#allocation3 + $0x10] sm:$0xff]
        %v410 = vld [vmem:[#allocation3 + $0x18] sm:$0xff]
        %v411 = vld [vmem:[#allocation3 + $0x20] sm:$0xff]
        %v412 = vld [vmem:[#allocation3 + $0x28] sm:$0xff]
        %v413 = vld [vmem:[#allocation3 + $0x30] sm:$0xff]
        %v414 = vld [vmem:[#allocation3 + $0x38] sm:$0xff]
        %v415 = vld [vmem:[#allocation3 + $0x40] sm:$0xf]
        %v416 = vld [vmem:[#allocation3 + $0x48] sm:$0xf]
        %v417 = vld [vmem:[%s2] sm:$0xf]
        %419 = vset.pattern.permute.xlu0 0
        %420 = vperm.xlu0 %419, %v417
        %v421 = vpop.permute.xlu0 %420
        %vm423 = vcmask 293888
        %v425 = vsel %vm423, %v406, 0
        %vm427 = vcmask 1043456
        %v429 = vsel %vm427, %v415, 0
        %v432 = vsel %vm427, %v416, 0
        %434 = vmatprep.subr.mxu0 0.0
        %435 = vmatpush1.msra.mxu0 0.0
        %436 = vmatprep.subr.mxu0 0.0
        %437 = vmatpush1.msra.mxu0 0.0
        %438 = vmatprep.subr.mxu0 0.0
        %439 = vmatpush1.msra.mxu0 0.0
        %440 = vmatprep.subr.mxu0 0.0
        %441 = vmatpush1.msra.mxu0 0.0
        %442 = vmatprep.subr.mxu0 0.0
        %443 = vmatpush1.msra.mxu0 0.0
        %444 = vmatprep.subr.mxu0 0.0
        %445 = vmatpush1.msra.mxu0 0.0
        %446 = vmatprep.subr.mxu0 0.0
        %447 = vmatpush1.msra.mxu0 0.0
        %448 = vmatprep.subr.mxu0 0.0
        %449 = vmatpush1.msra.mxu0 0.0
        %450 = vmatprep.subr.mxu0 0.0
        %451 = vmatpush1.msra.mxu0 0.0
        %452 = vmatprep.subr.mxu0 0.0
        %453 = vmatpush1.msra.mxu0 0.0
        %454 = vmatprep.subr.mxu0 0.0
        %455 = vmatpush1.msra.mxu0 0.0
        %456 = vmatprep.subr.mxu0 %v432
        %457 = vmatpush1.msra.mxu0 %v429
        %458 = vmatprep.subr.mxu0 %v414
        %459 = vmatpush1.msra.mxu0 %v413
        %460 = vmatprep.subr.mxu0 %v412
        %461 = vmatpush1.msra.mxu0 %v411
        %462 = vmatprep.subr.mxu0 %v410
        %463 = vmatpush1.msra.mxu0 %v409
        %464 = vmatprep.subr.mxu0 %v408
        %465 = vmatpush1.msra.mxu0 %v407
        %466 = vmatprep.subr.mxu0 0.0
        %467 = vmatpush2.msra.mxu0 0.0
        %468 = vmatprep.subr.mxu0 0.0
        %469 = vmatpush2.msra.mxu0 0.0
        %470 = vmatprep.subr.mxu0 0.0
        %471 = vmatpush2.msra.mxu0 0.0
        %472 = vmatprep.subr.mxu0 0.0
        %473 = vmatpush2.msra.mxu0 0.0
        %474 = vmatprep.subr.mxu0 0.0
        %475 = vmatpush2.msra.mxu0 0.0
        %476 = vmatprep.subr.mxu0 0.0
        %477 = vmatpush2.msra.mxu0 0.0
        %478 = vmatprep.subr.mxu0 0.0
        %479 = vmatpush2.msra.mxu0 0.0
        %480 = vmatprep.subr.mxu0 0.0
        %481 = vmatpush2.msra.mxu0 0.0
        %482 = vmatprep.subr.mxu0 0.0
        %483 = vmatpush2.msra.mxu0 0.0
        %484 = vmatprep.subr.mxu0 0.0
        %485 = vmatpush2.msra.mxu0 0.0
        %486 = vmatprep.subr.mxu0 0.0
        %487 = vmatpush2.msra.mxu0 0.0
        %488 = vmatprep.subr.mxu0 0.0
        %489 = vmatpush2.msra.mxu0 0.0
        %490 = vmatprep.subr.mxu0 0.0
        %491 = vmatpush2.msra.mxu0 0.0
        %492 = vmatprep.subr.mxu0 0.0
        %493 = vmatpush2.msra.mxu0 0.0
        %494 = vmatprep.subr.mxu0 0.0
        %495 = vmatpush2.msra.mxu0 0.0
        %496 = vmatprep.subr.mxu0 0.0
        %497 = vmatpush2.msra.mxu0 0.0
        %498 = vmatprep.mubr.f32.mxu0 0.0
        %499 = vmatmul.mubr.f32.gmra.mxu0 %v425
        %v500 = vpop.f32.mrf.mxu0
        %v501 = vadd.f32 %v421, %v500
        %v502 = vpop.f32.mrf.mxu0
        %v503 = vadd.f32 %v421, %v502
        %504 = vdwg.mxu0
        %v505 = vmax.f32 %v501, 0.0
        %v506 = vmax.f32 %v503, 0.0
        %v507 = vld [vmem:[%s164] sm:$0xff]
        %v509 = vcombine.high %v507, %v507
        %511 = vst [vmem:[%s186] sm:$0xf] %v507
        %512 = vst [vmem:[%s186 + $0x8] sm:$0xf] %v509
        %v515 = vrot.slane %v505, 4
        %v516 = vrot.slane %v506, 4
        %519 = vst [vmem:[%s186] sm:$0xf0] %v515
        %520 = vst [vmem:[%s186 + $0x8] sm:$0xf0] %v516
        %s521 = sand.u32 %s96, 1
        %s522 = scalar_lea.sflag [#allocation6], %s521
        %s523 = sand.u32 %s96, 1
        %s524 = smul.addr %s523, 16
        %s525 = scalar_lea.vmem [#allocation7], %s524
        // Predicated region
        $region37: #{tpu_custom_call.1} parent=31 // pred_check
          %p526 = pneg %p106
        $region38: #{tpu_custom_call.1} parent=31 // pred_check_branch
          %528 = sbr.rel (%p526) target = $region40
        $region39: #{tpu_custom_call.1} parent=31 // pred_region
          %s530 = ssub.s32 256, 256
          %531 = vsyncadd %s522, %s530
          %s532 = smul.addr %s20, 2
          %s533 = smul.addr %s532, 128
          %s534 = scalar_lea.hbm %s3, %s533
          %s536 = sshll.u32 %s525, 4
          %s537 = int_to_ptr.vmem [resolvable:$true] %s536
          %539 = dma.vmem_to_hbm [thread:$0]  %s537, 256, %s534, %s522
        $region40: #{tpu_custom_call.1} parent=31 // pred_fallthru
          _
      $region32: #{tpu_custom_call.1} parent=5 // pred_fallthru
        _
      %p540 = scmp.le.s32.totalorder 2, %s15
      // Predicated region
      $region41: #{tpu_custom_call.1} parent=5 // pred_check
        %p541 = pneg %p540
      $region42: #{tpu_custom_call.1} parent=5 // pred_check_branch
        %543 = sbr.rel (%p541) target = $region44
      $region43: #{tpu_custom_call.1} parent=5 // pred_region
        %s544 = ssub.s32 %s15, 2
        // Predicated region
        $region45: #{tpu_custom_call.1} parent=43 // pred_check
          %p545 = pneg %p112
        $region46: #{tpu_custom_call.1} parent=43 // pred_check_branch
          %547 = sbr.rel (%p545) target = $region48
        $region47: #{tpu_custom_call.1} parent=43 // pred_region
          %s548 = sand.u32 %s97, 1
          %s549 = scalar_lea.sflag [#allocation6], %s548
          %s550 = sand.u32 %s97, 1
          %s551 = smul.addr %s550, 16
          %s552 = scalar_lea.vmem [#allocation7], %s551
          %553 = dma.done %s549, 256
        $region48: #{tpu_custom_call.1} parent=43 // pred_fallthru
          _
      $region44: #{tpu_custom_call.1} parent=5 // pred_fallthru
        _
    $region6: #{tpu_custom_call.1} parent=1 // loop_footer
      %s19 = sadd.s32 1, %s15
    $region7: #{tpu_custom_call.1} parent=1 // loop_footer_branch
      %14 = sbr.rel target = $region3
    $region8: #{tpu_custom_call.1} parent=1 // loop_exit
      _
    %554 = vsyncpa [#allocation5], 1
    %s555 = scalar_lea.sflag [#allocation5], 1
    %556 = vsyncpa %s555, 1
    %557 = vsyncpa [#allocation6], 1
    %s558 = scalar_lea.sflag [#allocation6], 1
    %559 = vsyncpa %s558, 1

</llo_original>
